<compile_context>
chip_gen: v5e
topology: v5e:2x2
jax: 0.10.0
libtpu: 0.0.40
codegen_flags: <defaults>
</compile_context>

<pallas_src>
import functools

import numpy as np
import jax
import jax.numpy as jnp
from jax import lax
from jax.experimental import pallas as pl
from jax.experimental.pallas import tpu as pltpu

NTAPS = 25 + 1 + 9 + 25 + 49      # initial 5x5 + pyramid 1/3/5/7 taps


# ---------------------------------------------------------------------------
# helpers
# ---------------------------------------------------------------------------
def _mish(x):
    # x * tanh(softplus(x)) rewritten as exp + divide:
    #   t = exp(x); u = (1+t)^2; tanh(softplus(x)) = (u-1)/(u+1)
    # One transcendental instead of exp+log+tanh; x>20 fast path matches
    # F.softplus' threshold.  pl.reciprocal(u+1, approx=True) is the
    # production option if ~1e-3 extra error is acceptable.
    t = jnp.exp(jnp.minimum(x, 20.0))
    u = (1.0 + t) * (1.0 + t)
    return jnp.where(x > 20.0, x, x * (u - 1.0) / (u + 1.0))


def _geometry(H, W):
    """Zero-padded flattened canvas geometry (3-wide halo for the 7x7 conv)."""
    Hp, Wp = H + 6, W + 6
    PL = Hp * Wp                       # padded canvas length (flattened)
    PLp = -(-PL // 128) * 128          # lane-aligned canvas buffer length
    return Hp, Wp, PL, PLp


def _row_tile(R):
    for tr in (1024, 512, 256, 128, 64, 32, 16, 8):
        if R % tr == 0:
            return tr
    return R


def _probe_roll_convention():
    """True if pltpu.roll matches jnp.roll semantics (out[j] = x[j - shift])."""
    def kern(x_ref, o_ref):
        o_ref[...] = pltpu.roll(x_ref[...], 1, axis=1)
    x = jnp.broadcast_to(jnp.arange(128, dtype=jnp.float32)[None, :], (8, 128))
    r = pl.pallas_call(
        kern, out_shape=jax.ShapeDtypeStruct((8, 128), jnp.float32))(x)
    return bool(np.asarray(jax.device_get(r))[0, 0] == 127.0)


# ---------------------------------------------------------------------------
# Kernel 1: Mish + avg/max/median spatial pools (tiled over B*C rows)
# ---------------------------------------------------------------------------
def _row_median(y):
    """Exact per-row lower median (torch.median semantics) via radix select."""
    R, n = y.shape
    k = (n - 1) // 2                                      # 0-indexed target
    bits = pltpu.bitcast(y, jnp.int32)
    # order-preserving map: float32 -> monotone-unsigned 32-bit pattern
    key = jnp.where(bits < 0, ~bits, bits | jnp.int32(-(1 << 31)))
    kk = jnp.full((R, 1), k, jnp.int32)
    active = jnp.ones((R, n), jnp.int32)
    result = jnp.zeros((R, 1), jnp.int32)
    for b in range(31, -1, -1):
        bit = (key >> b) & 1                              # (R, n) in {0, 1}
        cnt0 = jnp.sum(active * (1 - bit), axis=-1, keepdims=True)
        take1 = kk >= cnt0                                # (R, 1) bool
        bval = -(1 << 31) if b == 31 else (1 << b)
        result = jnp.where(take1, result | bval, result)
        kk = jnp.where(take1, kk - cnt0, kk)
        want = jnp.where(take1, 1, 0)
        active = active * jnp.where(bit == want, 1, 0)
    # pick the float whose key equals the selected key (bijective transform)
    return jnp.max(jnp.where(key == result, y, -jnp.inf), axis=-1, keepdims=True)


def _mish_pool_kernel(x_ref, y_ref, pool_ref):
    x = x_ref[...].astype(jnp.float32)
    y = _mish(x)
    y_ref[...] = y
    avg = jnp.mean(y, axis=-1, keepdims=True)
    mx = jnp.max(y, axis=-1, keepdims=True)
    med = _row_median(y)
    lane = lax.broadcasted_iota(jnp.int32, pool_ref.shape, 1)
    pool_ref[...] = jnp.where(lane == 0, avg,
                              jnp.where(lane == 1, mx,
                                        jnp.where(lane == 2, med, 0.0)))


def _mish_and_pools(x2d):
    R, S = x2d.shape
    TR = _row_tile(R)
    return pl.pallas_call(
        _mish_pool_kernel,
        out_shape=(jax.ShapeDtypeStruct((R, S), jnp.float32),
                   jax.ShapeDtypeStruct((R, 8), jnp.float32)),
        grid=(R // TR,),
        in_specs=[pl.BlockSpec((TR, S), lambda i: (i, 0))],
        out_specs=(pl.BlockSpec((TR, S), lambda i: (i, 0)),
                   pl.BlockSpec((TR, 8), lambda i: (i, 0))),
        compiler_params=pltpu.CompilerParams(
            dimension_semantics=("parallel",)),
    )(x2d)


# ---------------------------------------------------------------------------
# Kernel 2: attention MLP + depthwise convs + final 1x1 conv + Mish (per batch)
# ---------------------------------------------------------------------------
def _mefa_main_kernel(pools_ref, y_ref, imask_ref,
                      w1_ref, b1_ref, w2_ref, b2_ref,
                      dww_ref, dwb_ref, wf_ref, bf_ref,
                      o_ref, canv_ref, feats_ref, fint_ref,
                      *, C, H, W, roll_is_jnp):
    f32 = jnp.float32
    Hp, Wp, PL, PLp = _geometry(H, W)
    HW = H * W

    def view(x, s):
        # v[:, j] == x[:, j + s] for every interior position j; the circular
        # wrap only touches halo positions, which are masked / never stored.
        if s == 0:
            return x
        amt = (-s) % PLp if roll_is_jnp else s % PLp
        return pltpu.roll(x, amt, axis=1)

    # ---- channel-attention MLP on the [avg, max, median] pools --------------
    pools = pools_ref[0]                                            # (C, 8)
    h1 = jnp.dot(w1_ref[...], pools, preferred_element_type=f32) + b1_ref[...]
    h1 = jnp.where(h1 >= 0.0, h1, 0.01 * h1)                        # leaky_relu
    h2 = jnp.dot(w2_ref[...], h1, preferred_element_type=f32) + b2_ref[...]
    sig = 1.0 / (1.0 + jnp.exp(-h2))                                # (C, 8)
    col = lax.broadcasted_iota(jnp.int32, sig.shape, 1)
    att = jnp.sum(jnp.where(col < 3, sig, 0.0), axis=1, keepdims=True)  # (C,1)

    # ---- zero-padded flattened canvas of the activated input, built in VMEM -
    canv_ref[...] = jnp.zeros_like(canv_ref)
    for h in range(H):
        dst = (h + 3) * Wp + 3
        canv_ref[:, dst:dst + W] = y_ref[0, :, h * W:(h + 1) * W]
    canvas = canv_ref[...]                                          # (C, PLp)

    # ---- initial 5x5 depthwise conv, attention folded into the taps once ----
    dww_att = dww_ref[:, :25] * att                                 # (C, 25)
    acc = jnp.zeros((C, PLp), f32)
    for di in range(-2, 3):
        base = view(canvas, di * Wp)
        for dj in range(-2, 3):
            idx = (di + 2) * 5 + (dj + 2)
            acc = acc + dww_att[:, idx:idx + 1] * view(base, dj)
    # bias on the interior only; halo stays zero so the pyramid sees zero-pad
    init = (acc + dwb_ref[:, 0:1]) * imask_ref[...]
    feats_ref[0:C, :] = init

    # ---- pyramid depthwise convs (k = 1,3,5,7), one level live at a time ----
    offs = (25, 26, 35, 60)
    for g, k in enumerate((1, 3, 5, 7)):
        p = k // 2
        lacc = jnp.zeros((C, PLp), f32)
        for di in range(-p, p + 1):
            base = view(init, di * Wp)
            for dj in range(-p, p + 1):
                idx = offs[g] + (di + p) * k + (dj + p)
                lacc = lacc + dww_ref[:, idx:idx + 1] * view(base, dj)
        feats_ref[(g + 1) * C:(g + 2) * C, :] = lacc + dwb_ref[:, g + 1:g + 2]

    # ---- extract the interior (5C, H*W) once, then a single MXU dot + Mish --
    for h in range(H):
        src = (h + 3) * Wp + 3
        fint_ref[:, h * W:(h + 1) * W] = feats_ref[:, src:src + W]
    # TODO(synk): cast wf/fint to bf16 (f32 accumulation) for production C;
    # kept f32 here for exactness at toy channel counts within 2e-3 tolerance.
    out = jnp.dot(wf_ref[...], fint_ref[...], preferred_element_type=f32)
    o_ref[0] = _mish(out + bf_ref[...])


def _mefa_main(pools8, y3d, imask, w1p, b1p, w2p, b2c, dww, dwb, wf, bf,
               *, C, H, W, roll_is_jnp):
    B = y3d.shape[0]
    Hp, Wp, PL, PLp = _geometry(H, W)
    HW = H * W
    Cip = w1p.shape[0]
    const = lambda b: (0, 0)
    kern = functools.partial(_mefa_main_kernel, C=C, H=H, W=W,
                             roll_is_jnp=roll_is_jnp)
    # TODO(synk): for production H,W add a spatial row-block grid axis with
    # halo re-fetch (keeps the per-step working set small on v7x's 64 MiB VMEM
    # and provides a second parallel axis when B == 1).
    return pl.pallas_call(
        kern,
        out_shape=jax.ShapeDtypeStruct((B, C, HW), jnp.float32),
        grid=(B,),
        in_specs=[
            pl.BlockSpec((1, C, 8), lambda b: (b, 0, 0)),
            pl.BlockSpec((1, C, HW), lambda b: (b, 0, 0)),
            pl.BlockSpec((1, PLp), const),
            pl.BlockSpec((Cip, C), const),
            pl.BlockSpec((Cip, 1), const),
            pl.BlockSpec((C, Cip), const),
            pl.BlockSpec((C, 1), const),
            pl.BlockSpec((C, NTAPS), const),
            pl.BlockSpec((C, 5), const),
            pl.BlockSpec((C, 5 * C), const),
            pl.BlockSpec((C, 1), const),
        ],
        out_specs=pl.BlockSpec((1, C, HW), lambda b: (b, 0, 0)),
        scratch_shapes=[pltpu.VMEM((C, PLp), jnp.float32),
                        pltpu.VMEM((5 * C, PLp), jnp.float32),
                        pltpu.VMEM((5 * C, HW), jnp.float32)],
        compiler_params=pltpu.CompilerParams(
            dimension_semantics=("parallel",),
            vmem_limit_bytes=32 * 1024 * 1024),
    )(pools8, y3d, imask, w1p, b1p, w2p, b2c, dww, dwb, wf, bf)


# ---------------------------------------------------------------------------
# Forward pass
# ---------------------------------------------------------------------------
def mefa_forward(x, params, *, roll_is_jnp=True):
    B, C, H, W = x.shape
    Hp, Wp, PL, PLp = _geometry(H, W)
    HW = H * W

    # stage 1: Mish + avg/max/median pools (Pallas, tiled over B*C rows)
    y2d, pools2d = _mish_and_pools(x.reshape(B * C, HW))
    pools8 = pools2d.reshape(B, C, 8)
    y3d = y2d.reshape(B, C, HW)

    # interior mask over the flattened padded canvas (static constant)
    m2 = np.zeros((Hp, Wp), np.float32)
    m2[3:3 + H, 3:3 + W] = 1.0
    imask_np = np.zeros((1, PLp), np.float32)
    imask_np[0, :PL] = m2.reshape(-1)
    imask = jnp.asarray(imask_np)

    # pack weights for the fused kernel
    Ci = params["fc1_w"].shape[0]
    Cip = max(8, -(-Ci // 8) * 8)
    w1p = jnp.zeros((Cip, C), jnp.float32).at[:Ci].set(params["fc1_w"])
    b1p = jnp.zeros((Cip, 1), jnp.float32).at[:Ci, 0].set(params["fc1_b"])
    w2p = jnp.zeros((C, Cip), jnp.float32).at[:, :Ci].set(params["fc2_w"])
    b2c = params["fc2_b"][:, None]
    dww = jnp.concatenate(
        [params["dw_init_w"].reshape(C, 25)]
        + [params["pyr_w"][i].reshape(C, k * k)
           for i, k in enumerate((1, 3, 5, 7))], axis=1)
    dwb = jnp.stack([params["dw_init_b"]] + list(params["pyr_b"]), axis=1)
    wf = params["final_w"].reshape(C, 5 * C)
    bf = params["final_b"][:, None]

    out_flat = _mefa_main(pools8, y3d, imask, w1p, b1p, w2p, b2c,
                          dww, dwb, wf, bf, C=C, H=H, W=W,
                          roll_is_jnp=roll_is_jnp)
    return out_flat.reshape(B, C, H, W)


# ---------------------------------------------------------------------------
# Pure-JAX reference (for validation)
# ---------------------------------------------------------------------------
def mefa_reference(x, params):
    B, C, H, W = x.shape
    mish = lambda v: v * jnp.tanh(jax.nn.softplus(v))
    hp = lax.Precision.HIGHEST
    y = mish(x)
    yf = y.reshape(B, C, -1)
    pools = [jnp.mean(yf, axis=-1), jnp.max(yf, axis=-1),
             jnp.sort(yf, axis=-1)[..., (H * W - 1) // 2]]

    def mlp(p):
        h = jnp.einsum("bc,ic->bi", p, params["fc1_w"], precision=hp) + params["fc1_b"]
        h = jnp.where(h >= 0, h, 0.01 * h)
        h = jnp.einsum("bi,ci->bc", h, params["fc2_w"], precision=hp) + params["fc2_b"]
        return jax.nn.sigmoid(h)

    att = sum(mlp(p) for p in pools)                       # (B, C)
    xs = y * att[:, :, None, None]

    def dconv(v, w, b, k):
        o = lax.conv_general_dilated(
            v, w, (1, 1), [(k // 2, k // 2)] * 2,
            dimension_numbers=("NCHW", "OIHW", "NCHW"),
            feature_group_count=C, precision=hp)
        return o + b[None, :, None, None]

    init = dconv(xs, params["dw_init_w"], params["dw_init_b"], 5)
    pyr = [dconv(init, params["pyr_w"][i], params["pyr_b"][i], k)
           for i, k in enumerate((1, 3, 5, 7))]
    comb = jnp.concatenate([init] + pyr, axis=1)
    out = jnp.einsum("oc,bchw->bohw", params["final_w"].reshape(C, 5 * C), comb,
                     precision=hp) + params["final_b"][None, :, None, None]
    return mish(out)


# ---------------------------------------------------------------------------
# Deterministic parameter init (shapes match MEFA.__init__, reduce=4)
# ---------------------------------------------------------------------------
def init_params(key, C, reduce=4):
    Ci = max(C // reduce, 1)
    ks = jax.random.split(key, 16)

    def u(k, shape, fan_in):
        b = 1.0 / np.sqrt(fan_in)
        return jax.random.uniform(k, shape, jnp.float32, -b, b)

    p = {
        "fc1_w": u(ks[0], (Ci, C), C), "fc1_b": u(ks[1], (Ci,), C),
        "fc2_w": u(ks[2], (C, Ci), Ci), "fc2_b": u(ks[3], (C,), Ci),
        "dw_init_w": u(ks[4], (C, 1, 5, 5), 25), "dw_init_b": u(ks[5], (C,), 25),
        "pyr_w": [], "pyr_b": [],
        "final_w": u(ks[14], (C, 5 * C, 1, 1), 5 * C),
        "final_b": u(ks[15], (C,), 5 * C),
    }
    for i, k in enumerate((1, 3, 5, 7)):
        p["pyr_w"].append(u(ks[6 + i], (C, 1, k, k), k * k))
        p["pyr_b"].append(u(ks[10 + i], (C,), k * k))
    return p


if __name__ == "__main__":
    B, C, H, W = 2, 8, 16, 16
    key = jax.random.PRNGKey(0)
    kx, kp = jax.random.split(key)
    x = jax.random.normal(kx, (B, C, H, W), dtype=jnp.float32)
    params = init_params(kp, C)

    roll_is_jnp = _probe_roll_convention()
    fwd = jax.jit(functools.partial(mefa_forward, roll_is_jnp=roll_is_jnp))
    out = jax.block_until_ready(fwd(x, params))
    assert out.shape == (B, C, H, W), out.shape

    ref = mefa_reference(x, params)
    np.testing.assert_allclose(np.asarray(out), np.asarray(ref),
                               rtol=2e-3, atol=2e-3)
    print("KERNEL_OK")
</pallas_src>

<mosaic_0001>
module attributes {stable_mosaic.version = 11 : i64} {
  func.func @kern(%arg0: memref<8x128xf32, #tpu.memory_space<vmem>>, %arg1: memref<8x128xf32, #tpu.memory_space<vmem>>) attributes {dimension_semantics = [], scalar_prefetch = 0 : i64, scratch_operands = 0 : i64, tpu.core_type = #tpu.core_type<tc>} {
    %c0 = arith.constant 0 : index
    %c0_0 = arith.constant 0 : index
    %0 = vector.load %arg0[%c0, %c0_0] : memref<8x128xf32, #tpu.memory_space<vmem>>, vector<8x128xf32>
    %c1_i32 = arith.constant 1 : i32
    %1 = tpu.dynamic_rotate %0 by %c1_i32 dim 1 : vector<8x128xf32>, i32 -> vector<8x128xf32>
    %c0_1 = arith.constant 0 : index
    %c0_2 = arith.constant 0 : index
    %2 = vector.load %arg1[%c0_1, %c0_2] : memref<8x128xf32, #tpu.memory_space<vmem>>, vector<8x128xf32>
    tpu.vector_store %arg1[%c0_1, %c0_2], %1 {strides = array<i32>} : memref<8x128xf32, #tpu.memory_space<vmem>>, vector<8x128xf32>,
    return
  }
}

</mosaic_0001>

<llo_original>
// kernel: tpu_custom_call.1
$region0: #{tpu_custom_call.1}
  #allocation0 [shape = 'u32[]', space=smem, size = 0x4, offset = 0x4, fixed_abs, tag = 'smem constant byte address 0x4 - core index']
  #allocation1 [shape = 'u32[72,128]{1,0:T(1,128)}', space=vmem, size = 0x9000, scoped, tag = 'internal scratch']
  %s0 = inlined_call_operand.hbm [shape: f32[8,128], index: 0, kind: input, shape index: {}]
  %s1 = inlined_call_operand.hbm [shape: f32[8,128], index: 1, kind: output, shape index: {}]
  %s2 = sld [smem:[#allocation0]]
  $region18: #{tpu_custom_call.1} parent=0
    _
  %s4 = ssub.s32 1, %s2
  %s5 = scalar_select 0, %s4, %s2
  $region1: #{tpu_custom_call.1} parent=0
    #allocation2 [shape = 'u8[4096]{0}', space=vmem, size = 0x1000, scoped, tag = 'input window, operand 0, single buffered']
    #allocation3 [shape = 's32[1]{0}', space=sflag, size = 0x4, scoped, tag = 'scoped memory for tpu_custom_call.1']
    #allocation4 [shape = 's32[1]{0}', space=sflag, size = 0x4, scoped, tag = 'scoped memory for tpu_custom_call.1']
    #allocation5 [shape = 'u8[4096]{0}', space=vmem, size = 0x1000, scoped, tag = 'output window, operand 0, single buffered']
    %6 = vsyncpa [#allocation3], 0
    %7 = vsyncpa [#allocation4], 0
    // Predicated region
    $region2: #{tpu_custom_call.1} parent=1 // pred_check
      _
    $region3: #{tpu_custom_call.1} parent=1 // pred_check_branch
      %9 = sbr.rel (0) target = $region5
    $region4: #{tpu_custom_call.1} parent=1 // pred_region
      %11 = vsyncadd [#allocation3], 0
      %s13 = sshll.u32 %s0, 4
      %s14 = int_to_ptr.hbm [resolvable:$true] %s13
      %s15 = sshll.u32 [#allocation2], 4
      %s16 = int_to_ptr.vmem [resolvable:$true] %s15
      %18 = dma.hbm_to_vmem [thread:$0]  %s14, 128, %s16, [#allocation3]
    $region5: #{tpu_custom_call.1} parent=1 // pred_fallthru
      _
    // Predicated region
    $region6: #{tpu_custom_call.1} parent=1 // pred_check
      _
    $region7: #{tpu_custom_call.1} parent=1 // pred_check_branch
      %20 = sbr.rel (0) target = $region9
    $region8: #{tpu_custom_call.1} parent=1 // pred_region
      %22 = dma.done [#allocation3], 128
    $region9: #{tpu_custom_call.1} parent=1 // pred_fallthru
      _
    %v23 = vld [vmem:[#allocation2] sm:$0xff]
    %24 = vrot.lane.b32.xlu0 %v23, 1
    %v25 = vpop.permute.xlu0 %24
    %26 = vst [vmem:[#allocation5] sm:$0xff] %v25
    // Predicated region
    $region10: #{tpu_custom_call.1} parent=1 // pred_check
      _
    $region11: #{tpu_custom_call.1} parent=1 // pred_check_branch
      %28 = sbr.rel (0) target = $region13
    $region12: #{tpu_custom_call.1} parent=1 // pred_region
      %30 = vsyncadd [#allocation4], 0
      %s32 = sshll.u32 [#allocation5], 4
      %s33 = int_to_ptr.vmem [resolvable:$true] %s32
      %s34 = sshll.u32 %s1, 4
      %s35 = int_to_ptr.hbm [resolvable:$true] %s34
      %37 = dma.vmem_to_hbm [thread:$0]  %s33, 128, %s35, [#allocation4]
    $region13: #{tpu_custom_call.1} parent=1 // pred_fallthru
      _
    // Predicated region
    $region14: #{tpu_custom_call.1} parent=1 // pred_check
      _
    $region15: #{tpu_custom_call.1} parent=1 // pred_check_branch
      %39 = sbr.rel (0) target = $region17
    $region16: #{tpu_custom_call.1} parent=1 // pred_region
      %41 = dma.done [#allocation4], 128
    $region17: #{tpu_custom_call.1} parent=1 // pred_fallthru
      _
    %42 = vsyncpa [#allocation3], 1
    %43 = vsyncpa [#allocation4], 1

</llo_original>
